<compile_context>
chip_gen: v7x
topology: tpu7x:2x2x1
jax: 0.10.0
libtpu: 0.0.40
codegen_flags: <defaults>
</compile_context>

<pallas_src>
import jax
import jax.numpy as jnp
from jax.experimental import pallas as pl
from jax.experimental.pallas import tpu as pltpu

NEG_SLOPE = 0.01   # F.leaky_relu default
LANE = 128
SUBLANE = 8


def _leaky_relu(v):
    return jnp.where(v > 0, v, NEG_SLOPE * v)


def _round_up(x, m):
    return ((x + m - 1) // m) * m


def _nbytes(a):
    n = 1
    for d in a.shape:
        n *= int(d)
    return n * a.dtype.itemsize


def _mlp_kernel(x_ref,
                w1_ref, b1_ref,
                w2_ref, b2_ref,
                w3_ref, b3_ref,
                w4_ref, b4_ref,
                w5_ref, b5_ref,
                out_ref):
    """Fused 5-layer MLP: bf16 MXU matmuls, f32 accumulation, leaky-ReLU."""
    h = x_ref[...]  # (TB, K) bf16
    h = _leaky_relu(
        jnp.dot(h, w1_ref[...], preferred_element_type=jnp.float32) + b1_ref[...])
    h = _leaky_relu(
        jnp.dot(h.astype(jnp.bfloat16), w2_ref[...],
                preferred_element_type=jnp.float32) + b2_ref[...])
    h = _leaky_relu(
        jnp.dot(h.astype(jnp.bfloat16), w3_ref[...],
                preferred_element_type=jnp.float32) + b3_ref[...])
    h = _leaky_relu(
        jnp.dot(h.astype(jnp.bfloat16), w4_ref[...],
                preferred_element_type=jnp.float32) + b4_ref[...])
    y = jnp.dot(h.astype(jnp.bfloat16), w5_ref[...],
                preferred_element_type=jnp.float32) + b5_ref[...]
    out_ref[...] = y
    # Dropout is the identity at inference time.
    # TODO(synk): training-mode dropout (pltpu.prng_seed / prng_random_bits)
    # not implemented.


@jax.jit
def deep_q_network_forward(state, params):
    """state: (B, input_dims) f32.  params: dict of f32 weights/biases.

    Weights are stored (in_features, out_features) so the kernel computes
    y = x @ W + b, identical to PyTorch's y = x @ W_t.T + b.
    """
    B, input_dims = state.shape
    H = params["w2"].shape[0]
    n_actions = params["w5"].shape[1]

    # Lane-dense padded dims (multiples of 128).
    K = _round_up(input_dims, LANE)
    Hp = _round_up(H, LANE)
    N = _round_up(n_actions, LANE)

    # Batch tiling: 256-row tiles for big batches, sublane-aligned for tiny.
    TB = 256 if B >= 256 else _round_up(B, SUBLANE)
    Bp = _round_up(B, TB)
    grid = (Bp // TB,)

    # --- pad + cast operands (zero padding preserves the math exactly) ---
    xp = jnp.zeros((Bp, K), jnp.bfloat16).at[:B, :input_dims].set(
        state.astype(jnp.bfloat16))

    def pad_w(w, rows, cols):
        return jnp.zeros((rows, cols), jnp.bfloat16).at[
            :w.shape[0], :w.shape[1]].set(w.astype(jnp.bfloat16))

    def pad_b(b, cols):
        return jnp.zeros((1, cols), jnp.float32).at[:, :b.shape[1]].set(
            b.astype(jnp.float32))

    w1, b1 = pad_w(params["w1"], K, Hp), pad_b(params["b1"], Hp)
    w2, b2 = pad_w(params["w2"], Hp, Hp), pad_b(params["b2"], Hp)
    w3, b3 = pad_w(params["w3"], Hp, Hp), pad_b(params["b3"], Hp)
    w4, b4 = pad_w(params["w4"], Hp, Hp), pad_b(params["b4"], Hp)
    w5, b5 = pad_w(params["w5"], Hp, N), pad_b(params["b5"], N)

    operands = (xp, w1, b1, w2, b2, w3, b3, w4, b4, w5, b5)

    # x / out tiles move with the grid; weights & biases stay resident
    # (constant block index -> DMA'd once, kept in VMEM across grid steps).
    x_spec = pl.BlockSpec((TB, K), lambda i: (i, 0))
    out_spec = pl.BlockSpec((TB, N), lambda i: (i, 0))

    def resident(shape):
        return pl.BlockSpec(shape, lambda i: (0, 0))

    in_specs = [x_spec] + [resident(op.shape) for op in operands[1:]]

    # VMEM budget: resident params + double-buffered x/out tiles +
    # f32 activation intermediates + headroom.  Capped below v7x's 64 MiB.
    resident_bytes = sum(_nbytes(op) for op in operands[1:])
    io_bytes = 2 * (TB * K * 2) + 2 * (TB * N * 4)
    inter_bytes = 6 * TB * Hp * 4
    vmem_limit = min(64 << 20, resident_bytes + io_bytes + inter_bytes + (8 << 20))

    out_padded = pl.pallas_call(
        _mlp_kernel,
        out_shape=jax.ShapeDtypeStruct((Bp, N), jnp.float32),
        grid=grid,
        in_specs=in_specs,
        out_specs=out_spec,
        compiler_params=pltpu.CompilerParams(
            dimension_semantics=("parallel",),
            vmem_limit_bytes=int(vmem_limit)),
    )(*operands)

    return out_padded[:B, :n_actions]


def init_params(key, input_dims, n_neurons_layer, n_actions):
    """xavier_uniform weights + torch-default uniform biases (all f32).

    Weights stored (in, out) — the transpose of torch's (out, in).
    """
    dims = [input_dims] + [n_neurons_layer] * 4 + [n_actions]
    params = {}
    for i in range(5):
        fan_in, fan_out = dims[i], dims[i + 1]
        key, wk, bk = jax.random.split(key, 3)
        limit = (6.0 / (fan_in + fan_out)) ** 0.5          # xavier_uniform
        w = jax.random.uniform(wk, (fan_in, fan_out), jnp.float32, -limit, limit)
        blim = 1.0 / (fan_in ** 0.5)                        # torch Linear bias
        b = jax.random.uniform(bk, (1, fan_out), jnp.float32, -blim, blim)
        params[f"w{i+1}"] = w
        params[f"b{i+1}"] = b
    return params


def reference_forward(state, params):
    """Pure-JAX reference mimicking the kernel numerics (bf16 in, f32 acc)."""
    def dot_bf16(x, w):
        return jnp.dot(x.astype(jnp.bfloat16), w.astype(jnp.bfloat16),
                       preferred_element_type=jnp.float32)

    x = state.astype(jnp.float32)
    for i in range(1, 5):
        x = _leaky_relu(dot_bf16(x, params[f"w{i}"]) + params[f"b{i}"])
    return dot_bf16(x, params["w5"]) + params["b5"]


if __name__ == "__main__":
    key = jax.random.PRNGKey(0)

    # Small shapes consistent with the module's forward pass.
    batch = 2
    input_dims = 16
    n_neurons_layer = 128
    n_actions = 4

    key, pk, xk = jax.random.split(key, 3)
    params = init_params(pk, input_dims, n_neurons_layer, n_actions)
    state = jax.random.normal(xk, (batch, input_dims), jnp.float32)

    out = deep_q_network_forward(state, params)
    out = jax.block_until_ready(out)

    ref = reference_forward(state, params)
    assert out.shape == (batch, n_actions), out.shape
    assert jnp.allclose(out, ref, atol=5e-3, rtol=5e-3), (
        "mismatch vs pure-JAX reference")

    print("KERNEL_OK")
</pallas_src>

<mosaic_0001>
module attributes {stable_mosaic.version = 11 : i64} {
  func.func @_mlp_kernel(%arg0: i32, %arg1: memref<8x128xbf16, #tpu.memory_space<vmem>>, %arg2: memref<128x128xbf16, #tpu.memory_space<vmem>>, %arg3: memref<1x128xf32, #tpu.memory_space<vmem>>, %arg4: memref<128x128xbf16, #tpu.memory_space<vmem>>, %arg5: memref<1x128xf32, #tpu.memory_space<vmem>>, %arg6: memref<128x128xbf16, #tpu.memory_space<vmem>>, %arg7: memref<1x128xf32, #tpu.memory_space<vmem>>, %arg8: memref<128x128xbf16, #tpu.memory_space<vmem>>, %arg9: memref<1x128xf32, #tpu.memory_space<vmem>>, %arg10: memref<128x128xbf16, #tpu.memory_space<vmem>>, %arg11: memref<1x128xf32, #tpu.memory_space<vmem>>, %arg12: memref<8x128xf32, #tpu.memory_space<vmem>>) attributes {dimension_semantics = [#tpu.dimension_semantics<parallel>], iteration_bounds = array<i64: 1>, scalar_prefetch = 0 : i64, scratch_operands = 0 : i64, tpu.core_type = #tpu.core_type<tc>, window_params = [{transform_indices = @transform_0, window_bounds = array<i64: 8, 128>}, {pipeline_mode = #tpu.pipeline_mode<synchronous>, transform_indices = @transform_1, window_bounds = array<i64: 128, 128>}, {pipeline_mode = #tpu.pipeline_mode<synchronous>, transform_indices = @transform_2, window_bounds = array<i64: 1, 128>}, {pipeline_mode = #tpu.pipeline_mode<synchronous>, transform_indices = @transform_3, window_bounds = array<i64: 128, 128>}, {pipeline_mode = #tpu.pipeline_mode<synchronous>, transform_indices = @transform_4, window_bounds = array<i64: 1, 128>}, {pipeline_mode = #tpu.pipeline_mode<synchronous>, transform_indices = @transform_5, window_bounds = array<i64: 128, 128>}, {pipeline_mode = #tpu.pipeline_mode<synchronous>, transform_indices = @transform_6, window_bounds = array<i64: 1, 128>}, {pipeline_mode = #tpu.pipeline_mode<synchronous>, transform_indices = @transform_7, window_bounds = array<i64: 128, 128>}, {pipeline_mode = #tpu.pipeline_mode<synchronous>, transform_indices = @transform_8, window_bounds = array<i64: 1, 128>}, {pipeline_mode = #tpu.pipeline_mode<synchronous>, transform_indices = @transform_9, window_bounds = array<i64: 128, 128>}, {pipeline_mode = #tpu.pipeline_mode<synchronous>, transform_indices = @transform_10, window_bounds = array<i64: 1, 128>}, {transform_indices = @transform_11, window_bounds = array<i64: 8, 128>}]} {
    %c0 = arith.constant 0 : index
    %c0_0 = arith.constant 0 : index
    %0 = vector.load %arg1[%c0, %c0_0] : memref<8x128xbf16, #tpu.memory_space<vmem>>, vector<8x128xbf16>
    %c0_1 = arith.constant 0 : index
    %c0_2 = arith.constant 0 : index
    %1 = vector.load %arg2[%c0_1, %c0_2] : memref<128x128xbf16, #tpu.memory_space<vmem>>, vector<128x128xbf16>
    %cst = arith.constant dense<0.000000e+00> : vector<8x128xf32>
    %2 = tpu.matmul %0, %1, %cst {dimension_numbers = #tpu.dot_dimension_numbers<[1], [0], [0], [1], [0, 0, 1, 1], [], []>} : vector<8x128xbf16>, vector<128x128xbf16>, vector<8x128xf32> -> vector<8x128xf32>
    %c0_3 = arith.constant 0 : index
    %c0_4 = arith.constant 0 : index
    %3 = vector.load %arg3[%c0_3, %c0_4] : memref<1x128xf32, #tpu.memory_space<vmem>>, vector<1x128xf32>
    %4 = vector.broadcast %3 : vector<1x128xf32> to vector<8x128xf32>
    %5 = arith.addf %2, %4 : vector<8x128xf32>
    %cst_5 = arith.constant 0.000000e+00 : f32
    %6 = vector.broadcast %cst_5 : f32 to vector<8x128xf32>
    %7 = arith.cmpf ogt, %5, %6 : vector<8x128xf32>
    %cst_6 = arith.constant 0.00999999977 : f32
    %8 = vector.broadcast %cst_6 : f32 to vector<8x128xf32>
    %9 = arith.mulf %8, %5 : vector<8x128xf32>
    %10 = arith.select %7, %5, %9 : vector<8x128xi1>, vector<8x128xf32>
    %11 = arith.truncf %10 : vector<8x128xf32> to vector<8x128xbf16>
    %c0_7 = arith.constant 0 : index
    %c0_8 = arith.constant 0 : index
    %12 = vector.load %arg4[%c0_7, %c0_8] : memref<128x128xbf16, #tpu.memory_space<vmem>>, vector<128x128xbf16>
    %cst_9 = arith.constant dense<0.000000e+00> : vector<8x128xf32>
    %13 = tpu.matmul %11, %12, %cst_9 {dimension_numbers = #tpu.dot_dimension_numbers<[1], [0], [0], [1], [0, 0, 1, 1], [], []>} : vector<8x128xbf16>, vector<128x128xbf16>, vector<8x128xf32> -> vector<8x128xf32>
    %c0_10 = arith.constant 0 : index
    %c0_11 = arith.constant 0 : index
    %14 = vector.load %arg5[%c0_10, %c0_11] : memref<1x128xf32, #tpu.memory_space<vmem>>, vector<1x128xf32>
    %15 = vector.broadcast %14 : vector<1x128xf32> to vector<8x128xf32>
    %16 = arith.addf %13, %15 : vector<8x128xf32>
    %cst_12 = arith.constant 0.000000e+00 : f32
    %17 = vector.broadcast %cst_12 : f32 to vector<8x128xf32>
    %18 = arith.cmpf ogt, %16, %17 : vector<8x128xf32>
    %cst_13 = arith.constant 0.00999999977 : f32
    %19 = vector.broadcast %cst_13 : f32 to vector<8x128xf32>
    %20 = arith.mulf %19, %16 : vector<8x128xf32>
    %21 = arith.select %18, %16, %20 : vector<8x128xi1>, vector<8x128xf32>
    %22 = arith.truncf %21 : vector<8x128xf32> to vector<8x128xbf16>
    %c0_14 = arith.constant 0 : index
    %c0_15 = arith.constant 0 : index
    %23 = vector.load %arg6[%c0_14, %c0_15] : memref<128x128xbf16, #tpu.memory_space<vmem>>, vector<128x128xbf16>
    %cst_16 = arith.constant dense<0.000000e+00> : vector<8x128xf32>
    %24 = tpu.matmul %22, %23, %cst_16 {dimension_numbers = #tpu.dot_dimension_numbers<[1], [0], [0], [1], [0, 0, 1, 1], [], []>} : vector<8x128xbf16>, vector<128x128xbf16>, vector<8x128xf32> -> vector<8x128xf32>
    %c0_17 = arith.constant 0 : index
    %c0_18 = arith.constant 0 : index
    %25 = vector.load %arg7[%c0_17, %c0_18] : memref<1x128xf32, #tpu.memory_space<vmem>>, vector<1x128xf32>
    %26 = vector.broadcast %25 : vector<1x128xf32> to vector<8x128xf32>
    %27 = arith.addf %24, %26 : vector<8x128xf32>
    %cst_19 = arith.constant 0.000000e+00 : f32
    %28 = vector.broadcast %cst_19 : f32 to vector<8x128xf32>
    %29 = arith.cmpf ogt, %27, %28 : vector<8x128xf32>
    %cst_20 = arith.constant 0.00999999977 : f32
    %30 = vector.broadcast %cst_20 : f32 to vector<8x128xf32>
    %31 = arith.mulf %30, %27 : vector<8x128xf32>
    %32 = arith.select %29, %27, %31 : vector<8x128xi1>, vector<8x128xf32>
    %33 = arith.truncf %32 : vector<8x128xf32> to vector<8x128xbf16>
    %c0_21 = arith.constant 0 : index
    %c0_22 = arith.constant 0 : index
    %34 = vector.load %arg8[%c0_21, %c0_22] : memref<128x128xbf16, #tpu.memory_space<vmem>>, vector<128x128xbf16>
    %cst_23 = arith.constant dense<0.000000e+00> : vector<8x128xf32>
    %35 = tpu.matmul %33, %34, %cst_23 {dimension_numbers = #tpu.dot_dimension_numbers<[1], [0], [0], [1], [0, 0, 1, 1], [], []>} : vector<8x128xbf16>, vector<128x128xbf16>, vector<8x128xf32> -> vector<8x128xf32>
    %c0_24 = arith.constant 0 : index
    %c0_25 = arith.constant 0 : index
    %36 = vector.load %arg9[%c0_24, %c0_25] : memref<1x128xf32, #tpu.memory_space<vmem>>, vector<1x128xf32>
    %37 = vector.broadcast %36 : vector<1x128xf32> to vector<8x128xf32>
    %38 = arith.addf %35, %37 : vector<8x128xf32>
    %cst_26 = arith.constant 0.000000e+00 : f32
    %39 = vector.broadcast %cst_26 : f32 to vector<8x128xf32>
    %40 = arith.cmpf ogt, %38, %39 : vector<8x128xf32>
    %cst_27 = arith.constant 0.00999999977 : f32
    %41 = vector.broadcast %cst_27 : f32 to vector<8x128xf32>
    %42 = arith.mulf %41, %38 : vector<8x128xf32>
    %43 = arith.select %40, %38, %42 : vector<8x128xi1>, vector<8x128xf32>
    %44 = arith.truncf %43 : vector<8x128xf32> to vector<8x128xbf16>
    %c0_28 = arith.constant 0 : index
    %c0_29 = arith.constant 0 : index
    %45 = vector.load %arg10[%c0_28, %c0_29] : memref<128x128xbf16, #tpu.memory_space<vmem>>, vector<128x128xbf16>
    %cst_30 = arith.constant dense<0.000000e+00> : vector<8x128xf32>
    %46 = tpu.matmul %44, %45, %cst_30 {dimension_numbers = #tpu.dot_dimension_numbers<[1], [0], [0], [1], [0, 0, 1, 1], [], []>} : vector<8x128xbf16>, vector<128x128xbf16>, vector<8x128xf32> -> vector<8x128xf32>
    %c0_31 = arith.constant 0 : index
    %c0_32 = arith.constant 0 : index
    %47 = vector.load %arg11[%c0_31, %c0_32] : memref<1x128xf32, #tpu.memory_space<vmem>>, vector<1x128xf32>
    %48 = vector.broadcast %47 : vector<1x128xf32> to vector<8x128xf32>
    %49 = arith.addf %46, %48 : vector<8x128xf32>
    %c0_33 = arith.constant 0 : index
    %c0_34 = arith.constant 0 : index
    %50 = vector.load %arg12[%c0_33, %c0_34] : memref<8x128xf32, #tpu.memory_space<vmem>>, vector<8x128xf32>
    tpu.vector_store %arg12[%c0_33, %c0_34], %49 {strides = array<i32>} : memref<8x128xf32, #tpu.memory_space<vmem>>, vector<8x128xf32>,
    return
  }
  func.func @transform_0(%arg0: i32) -> (i32, i32) {
    %c0_i32 = arith.constant 0 : i32
    %c0_i32_0 = arith.constant 0 : i32
    return %arg0, %c0_i32 : i32, i32
  }
  func.func @transform_1(%arg0: i32) -> (i32, i32) {
    %c0_i32 = arith.constant 0 : i32
    %c0_i32_0 = arith.constant 0 : i32
    %c0_i32_1 = arith.constant 0 : i32
    return %c0_i32, %c0_i32_0 : i32, i32
  }
  func.func @transform_2(%arg0: i32) -> (i32, i32) {
    %c0_i32 = arith.constant 0 : i32
    %c0_i32_0 = arith.constant 0 : i32
    %c0_i32_1 = arith.constant 0 : i32
    return %c0_i32, %c0_i32_0 : i32, i32
  }
  func.func @transform_3(%arg0: i32) -> (i32, i32) {
    %c0_i32 = arith.constant 0 : i32
    %c0_i32_0 = arith.constant 0 : i32
    %c0_i32_1 = arith.constant 0 : i32
    return %c0_i32, %c0_i32_0 : i32, i32
  }
  func.func @transform_4(%arg0: i32) -> (i32, i32) {
    %c0_i32 = arith.constant 0 : i32
    %c0_i32_0 = arith.constant 0 : i32
    %c0_i32_1 = arith.constant 0 : i32
    return %c0_i32, %c0_i32_0 : i32, i32
  }
  func.func @transform_5(%arg0: i32) -> (i32, i32) {
    %c0_i32 = arith.constant 0 : i32
    %c0_i32_0 = arith.constant 0 : i32
    %c0_i32_1 = arith.constant 0 : i32
    return %c0_i32, %c0_i32_0 : i32, i32
  }
  func.func @transform_6(%arg0: i32) -> (i32, i32) {
    %c0_i32 = arith.constant 0 : i32
    %c0_i32_0 = arith.constant 0 : i32
    %c0_i32_1 = arith.constant 0 : i32
    return %c0_i32, %c0_i32_0 : i32, i32
  }
  func.func @transform_7(%arg0: i32) -> (i32, i32) {
    %c0_i32 = arith.constant 0 : i32
    %c0_i32_0 = arith.constant 0 : i32
    %c0_i32_1 = arith.constant 0 : i32
    return %c0_i32, %c0_i32_0 : i32, i32
  }
  func.func @transform_8(%arg0: i32) -> (i32, i32) {
    %c0_i32 = arith.constant 0 : i32
    %c0_i32_0 = arith.constant 0 : i32
    %c0_i32_1 = arith.constant 0 : i32
    return %c0_i32, %c0_i32_0 : i32, i32
  }
  func.func @transform_9(%arg0: i32) -> (i32, i32) {
    %c0_i32 = arith.constant 0 : i32
    %c0_i32_0 = arith.constant 0 : i32
    %c0_i32_1 = arith.constant 0 : i32
    return %c0_i32, %c0_i32_0 : i32, i32
  }
  func.func @transform_10(%arg0: i32) -> (i32, i32) {
    %c0_i32 = arith.constant 0 : i32
    %c0_i32_0 = arith.constant 0 : i32
    %c0_i32_1 = arith.constant 0 : i32
    return %c0_i32, %c0_i32_0 : i32, i32
  }
  func.func @transform_11(%arg0: i32) -> (i32, i32) {
    %c0_i32 = arith.constant 0 : i32
    %c0_i32_0 = arith.constant 0 : i32
    return %arg0, %c0_i32 : i32, i32
  }
}

</mosaic_0001>

<llo_original>
// kernel: deep_q_network_forward.1
$region0: #{deep_q_network_forward.1}
  #allocation0 [shape = 'u32[]', space=smem, size = 0x4, offset = 0x4, fixed_abs, tag = 'smem constant byte address 0x4 - core index']
  #allocation1 [shape = 'u32[144,128]{1,0:T(1,128)}', space=vmem, size = 0x12000, scoped, tag = 'internal scratch']
  %s0 = inlined_call_operand.vmem [shape: bf16[8,128], index: 0, kind: input, shape index: {}]
  %s1 = inlined_call_operand.vmem [shape: bf16[128,128], index: 1, kind: input, shape index: {}]
  %s2 = inlined_call_operand.vmem [shape: f32[1,128], index: 2, kind: input, shape index: {}]
  %s3 = inlined_call_operand.vmem [shape: bf16[128,128], index: 3, kind: input, shape index: {}]
  %s4 = inlined_call_operand.vmem [shape: f32[1,128], index: 4, kind: input, shape index: {}]
  %s5 = inlined_call_operand.vmem [shape: bf16[128,128], index: 5, kind: input, shape index: {}]
  %s6 = inlined_call_operand.vmem [shape: f32[1,128], index: 6, kind: input, shape index: {}]
  %s7 = inlined_call_operand.vmem [shape: bf16[128,128], index: 7, kind: input, shape index: {}]
  %s8 = inlined_call_operand.vmem [shape: f32[1,128], index: 8, kind: input, shape index: {}]
  %s9 = inlined_call_operand.vmem [shape: bf16[128,128], index: 9, kind: input, shape index: {}]
  %s10 = inlined_call_operand.vmem [shape: f32[1,128], index: 10, kind: input, shape index: {}]
  %s11 = inlined_call_operand.vmem [shape: f32[8,128], index: 11, kind: output, shape index: {}]
  %s12 = sld [smem:[#allocation0]]
  $region54: #{deep_q_network_forward.1} parent=0
    _
  %s14 = ssub.s32 1, %s12
  %s15 = scalar_select 0, %s14, %s12
  // Predicated region
  $region2: #{deep_q_network_forward.1} parent=0 // pred_check
    _
  $region3: #{deep_q_network_forward.1} parent=0 // pred_check_branch
    %17 = sbr.rel (0) target = $region5
  $region4: #{deep_q_network_forward.1} parent=0 // pred_region
    _
  $region5: #{deep_q_network_forward.1} parent=0 // pred_fallthru
    _
  // Predicated region
  $region6: #{deep_q_network_forward.1} parent=0 // pred_check
    _
  $region7: #{deep_q_network_forward.1} parent=0 // pred_check_branch
    %19 = sbr.rel (0) target = $region9
  $region8: #{deep_q_network_forward.1} parent=0 // pred_region
    _
  $region9: #{deep_q_network_forward.1} parent=0 // pred_fallthru
    _
  // Predicated region
  $region10: #{deep_q_network_forward.1} parent=0 // pred_check
    _
  $region11: #{deep_q_network_forward.1} parent=0 // pred_check_branch
    %21 = sbr.rel (0) target = $region13
  $region12: #{deep_q_network_forward.1} parent=0 // pred_region
    _
  $region13: #{deep_q_network_forward.1} parent=0 // pred_fallthru
    _
  // Predicated region
  $region14: #{deep_q_network_forward.1} parent=0 // pred_check
    _
  $region15: #{deep_q_network_forward.1} parent=0 // pred_check_branch
    %23 = sbr.rel (0) target = $region17
  $region16: #{deep_q_network_forward.1} parent=0 // pred_region
    _
  $region17: #{deep_q_network_forward.1} parent=0 // pred_fallthru
    _
  // Predicated region
  $region18: #{deep_q_network_forward.1} parent=0 // pred_check
    _
  $region19: #{deep_q_network_forward.1} parent=0 // pred_check_branch
    %25 = sbr.rel (0) target = $region21
  $region20: #{deep_q_network_forward.1} parent=0 // pred_region
    _
  $region21: #{deep_q_network_forward.1} parent=0 // pred_fallthru
    _
  // Predicated region
  $region22: #{deep_q_network_forward.1} parent=0 // pred_check
    _
  $region23: #{deep_q_network_forward.1} parent=0 // pred_check_branch
    %27 = sbr.rel (0) target = $region25
  $region24: #{deep_q_network_forward.1} parent=0 // pred_region
    _
  $region25: #{deep_q_network_forward.1} parent=0 // pred_fallthru
    _
  // Predicated region
  $region26: #{deep_q_network_forward.1} parent=0 // pred_check
    _
  $region27: #{deep_q_network_forward.1} parent=0 // pred_check_branch
    %29 = sbr.rel (0) target = $region29
  $region28: #{deep_q_network_forward.1} parent=0 // pred_region
    _
  $region29: #{deep_q_network_forward.1} parent=0 // pred_fallthru
    _
  // Predicated region
  $region30: #{deep_q_network_forward.1} parent=0 // pred_check
    _
  $region31: #{deep_q_network_forward.1} parent=0 // pred_check_branch
    %31 = sbr.rel (0) target = $region33
  $region32: #{deep_q_network_forward.1} parent=0 // pred_region
    _
  $region33: #{deep_q_network_forward.1} parent=0 // pred_fallthru
    _
  // Predicated region
  $region34: #{deep_q_network_forward.1} parent=0 // pred_check
    _
  $region35: #{deep_q_network_forward.1} parent=0 // pred_check_branch
    %33 = sbr.rel (0) target = $region37
  $region36: #{deep_q_network_forward.1} parent=0 // pred_region
    _
  $region37: #{deep_q_network_forward.1} parent=0 // pred_fallthru
    _
  // Predicated region
  $region38: #{deep_q_network_forward.1} parent=0 // pred_check
    _
  $region39: #{deep_q_network_forward.1} parent=0 // pred_check_branch
    %35 = sbr.rel (0) target = $region41
  $region40: #{deep_q_network_forward.1} parent=0 // pred_region
    _
  $region41: #{deep_q_network_forward.1} parent=0 // pred_fallthru
    _
  // Predicated region
  $region42: #{deep_q_network_forward.1} parent=0 // pred_check
    _
  $region43: #{deep_q_network_forward.1} parent=0 // pred_check_branch
    %37 = sbr.rel (0) target = $region45
  $region44: #{deep_q_network_forward.1} parent=0 // pred_region
    _
  $region45: #{deep_q_network_forward.1} parent=0 // pred_fallthru
    _
  %v39 = vld [vmem:[%s0] sm:$0xf]
  %v40 = vld [vmem:[%s1] sm:$0xf]
  %v41 = vld [vmem:[%s1 + $0x4] sm:$0xf]
  %v42 = vld [vmem:[%s1 + $0x8] sm:$0xf]
  %v43 = vld [vmem:[%s1 + $0xc] sm:$0xf]
  %v44 = vld [vmem:[%s1 + $0x10] sm:$0xf]
  %v45 = vld [vmem:[%s1 + $0x14] sm:$0xf]
  %v46 = vld [vmem:[%s1 + $0x18] sm:$0xf]
  %v47 = vld [vmem:[%s1 + $0x1c] sm:$0xf]
  %v48 = vld [vmem:[%s1 + $0x20] sm:$0xf]
  %v49 = vld [vmem:[%s1 + $0x24] sm:$0xf]
  %v50 = vld [vmem:[%s1 + $0x28] sm:$0xf]
  %v51 = vld [vmem:[%s1 + $0x2c] sm:$0xf]
  %v52 = vld [vmem:[%s1 + $0x30] sm:$0xf]
  %v53 = vld [vmem:[%s1 + $0x34] sm:$0xf]
  %v54 = vld [vmem:[%s1 + $0x38] sm:$0xf]
  %v55 = vld [vmem:[%s1 + $0x3c] sm:$0xf]
  %v56 = vld [vmem:[%s2] sm:$0x1]
  %v58 = vlaneseq
  %v59 = vshrl.u32 %v58, 7
  %v60 = vsub.s32 0, %v59
  %v61 = vrot.slane %v56, %v60
  %v79 = vunpack.c.l.b16 %v40
  %v80 = vunpack.c.l.b16 %v41
  %v81 = vunpack.c.l.b16 %v42
  %v82 = vunpack.c.l.b16 %v43
  %v83 = vunpack.c.l.b16 %v44
  %v84 = vunpack.c.l.b16 %v45
  %v85 = vunpack.c.l.b16 %v46
  %v86 = vunpack.c.l.b16 %v47
  %v87 = vunpack.c.l.b16 %v48
  %v88 = vunpack.c.l.b16 %v49
  %v89 = vunpack.c.l.b16 %v50
  %v90 = vunpack.c.l.b16 %v51
  %v91 = vunpack.c.l.b16 %v52
  %v92 = vunpack.c.l.b16 %v53
  %v93 = vunpack.c.l.b16 %v54
  %v94 = vunpack.c.l.b16 %v55
  %v95 = vpack.c.b16 %v80, %v79
  %v96 = vpack.c.b16 %v82, %v81
  %v97 = vpack.c.b16 %v84, %v83
  %v98 = vpack.c.b16 %v86, %v85
  %v99 = vpack.c.b16 %v88, %v87
  %v100 = vpack.c.b16 %v90, %v89
  %v101 = vpack.c.b16 %v92, %v91
  %v102 = vpack.c.b16 %v94, %v93
  %111 = vmatprep.subr.bf16.mxu0 0
  %112 = vmatpush1.bf16.msra.mxu0 %v95
  %113 = vmatprep.subr.bf16.mxu0 0
  %114 = vmatpush1.bf16.msra.mxu0 %v96
  %115 = vmatprep.subr.bf16.mxu0 0
  %116 = vmatpush1.bf16.msra.mxu0 %v97
  %117 = vmatprep.subr.bf16.mxu0 0
  %118 = vmatpush1.bf16.msra.mxu0 %v98
  %119 = vmatprep.subr.bf16.mxu0 0
  %120 = vmatpush1.bf16.msra.mxu0 %v99
  %121 = vmatprep.subr.bf16.mxu0 0
  %122 = vmatpush1.bf16.msra.mxu0 %v100
  %123 = vmatprep.subr.bf16.mxu0 0
  %124 = vmatpush1.bf16.msra.mxu0 %v101
  %125 = vmatprep.subr.bf16.mxu0 0
  %126 = vmatpush1.bf16.msra.mxu0 %v102
  %127 = vmatprep.subr.bf16.mxu0 0
  %128 = vmatpush1.bf16.msra.mxu0 0
  %129 = vmatprep.subr.bf16.mxu0 0
  %130 = vmatpush1.bf16.msra.mxu0 0
  %131 = vmatprep.subr.bf16.mxu0 0
  %132 = vmatpush1.bf16.msra.mxu0 0
  %133 = vmatprep.subr.bf16.mxu0 0
  %134 = vmatpush1.bf16.msra.mxu0 0
  %135 = vmatprep.subr.bf16.mxu0 0
  %136 = vmatpush1.bf16.msra.mxu0 0
  %137 = vmatprep.subr.bf16.mxu0 0
  %138 = vmatpush1.bf16.msra.mxu0 0
  %139 = vmatprep.subr.bf16.mxu0 0
  %140 = vmatpush1.bf16.msra.mxu0 0
  %141 = vmatprep.subr.bf16.mxu0 0
  %142 = vmatpush1.bf16.msra.mxu0 0
  %143 = vmatprep.mubr.bf16.mxu0 0
  %144 = vmatmul.mubr.bf16.gmra.mrb[0].mxu0 %v39
  %v145 = vpop.f32.mrb[0].mxu0
  %v146 = vadd.f32 %v61, %v145
  %v147 = vpop.f32.mrb[0].mxu0
  %v148 = vpop.f32.mrb[0].mxu0
  %v149 = vpop.f32.mrb[0].mxu0
  %150 = vdwg.mxu0
  %vm151 = vcmp.gt.f32.partialorder %v146, 0.0
  %v152 = vmul.f32 %v146, 0.01
  %v153 = vsel %vm151, %v146, %v152
  %v154 = vpack.c.bf16 %v153, %v153
  %v155 = vld [vmem:[%s3] sm:$0xf]
  %v156 = vld [vmem:[%s3 + $0x4] sm:$0xf]
  %v157 = vld [vmem:[%s3 + $0x8] sm:$0xf]
  %v158 = vld [vmem:[%s3 + $0xc] sm:$0xf]
  %v159 = vld [vmem:[%s3 + $0x10] sm:$0xf]
  %v160 = vld [vmem:[%s3 + $0x14] sm:$0xf]
  %v161 = vld [vmem:[%s3 + $0x18] sm:$0xf]
  %v162 = vld [vmem:[%s3 + $0x1c] sm:$0xf]
  %v163 = vld [vmem:[%s3 + $0x20] sm:$0xf]
  %v164 = vld [vmem:[%s3 + $0x24] sm:$0xf]
  %v165 = vld [vmem:[%s3 + $0x28] sm:$0xf]
  %v166 = vld [vmem:[%s3 + $0x2c] sm:$0xf]
  %v167 = vld [vmem:[%s3 + $0x30] sm:$0xf]
  %v168 = vld [vmem:[%s3 + $0x34] sm:$0xf]
  %v169 = vld [vmem:[%s3 + $0x38] sm:$0xf]
  %v170 = vld [vmem:[%s3 + $0x3c] sm:$0xf]
  %v171 = vld [vmem:[%s4] sm:$0x1]
  %v173 = vlaneseq
  %v174 = vshrl.u32 %v173, 7
  %v175 = vsub.s32 0, %v174
  %v176 = vrot.slane %v171, %v175
  %v194 = vunpack.c.l.b16 %v155
  %v195 = vunpack.c.l.b16 %v156
  %v196 = vunpack.c.l.b16 %v157
  %v197 = vunpack.c.l.b16 %v158
  %v198 = vunpack.c.l.b16 %v159
  %v199 = vunpack.c.l.b16 %v160
  %v200 = vunpack.c.l.b16 %v161
  %v201 = vunpack.c.l.b16 %v162
  %v202 = vunpack.c.l.b16 %v163
  %v203 = vunpack.c.l.b16 %v164
  %v204 = vunpack.c.l.b16 %v165
  %v205 = vunpack.c.l.b16 %v166
  %v206 = vunpack.c.l.b16 %v167
  %v207 = vunpack.c.l.b16 %v168
  %v208 = vunpack.c.l.b16 %v169
  %v209 = vunpack.c.l.b16 %v170
  %v210 = vpack.c.b16 %v195, %v194
  %v211 = vpack.c.b16 %v197, %v196
  %v212 = vpack.c.b16 %v199, %v198
  %v213 = vpack.c.b16 %v201, %v200
  %v214 = vpack.c.b16 %v203, %v202
  %v215 = vpack.c.b16 %v205, %v204
  %v216 = vpack.c.b16 %v207, %v206
  %v217 = vpack.c.b16 %v209, %v208
  %226 = vmatprep.subr.bf16.mxu0 0
  %227 = vmatpush1.bf16.msra.mxu0 %v210
  %228 = vmatprep.subr.bf16.mxu0 0
  %229 = vmatpush1.bf16.msra.mxu0 %v211
  %230 = vmatprep.subr.bf16.mxu0 0
  %231 = vmatpush1.bf16.msra.mxu0 %v212
  %232 = vmatprep.subr.bf16.mxu0 0
  %233 = vmatpush1.bf16.msra.mxu0 %v213
  %234 = vmatprep.subr.bf16.mxu0 0
  %235 = vmatpush1.bf16.msra.mxu0 %v214
  %236 = vmatprep.subr.bf16.mxu0 0
  %237 = vmatpush1.bf16.msra.mxu0 %v215
  %238 = vmatprep.subr.bf16.mxu0 0
  %239 = vmatpush1.bf16.msra.mxu0 %v216
  %240 = vmatprep.subr.bf16.mxu0 0
  %241 = vmatpush1.bf16.msra.mxu0 %v217
  %242 = vmatprep.subr.bf16.mxu0 0
  %243 = vmatpush1.bf16.msra.mxu0 0
  %244 = vmatprep.subr.bf16.mxu0 0
  %245 = vmatpush1.bf16.msra.mxu0 0
  %246 = vmatprep.subr.bf16.mxu0 0
  %247 = vmatpush1.bf16.msra.mxu0 0
  %248 = vmatprep.subr.bf16.mxu0 0
  %249 = vmatpush1.bf16.msra.mxu0 0
  %250 = vmatprep.subr.bf16.mxu0 0
  %251 = vmatpush1.bf16.msra.mxu0 0
  %252 = vmatprep.subr.bf16.mxu0 0
  %253 = vmatpush1.bf16.msra.mxu0 0
  %254 = vmatprep.subr.bf16.mxu0 0
  %255 = vmatpush1.bf16.msra.mxu0 0
  %256 = vmatprep.subr.bf16.mxu0 0
  %257 = vmatpush1.bf16.msra.mxu0 0
  %258 = vmatprep.mubr.bf16.mxu0 0
  %259 = vmatmul.mubr.bf16.gmra.mrb[0].mxu0 %v154
  %v260 = vpop.f32.mrb[0].mxu0
  %v261 = vadd.f32 %v176, %v260
  %v262 = vpop.f32.mrb[0].mxu0
  %v263 = vpop.f32.mrb[0].mxu0
  %v264 = vpop.f32.mrb[0].mxu0
  %265 = vdwg.mxu0
  %vm266 = vcmp.gt.f32.partialorder %v261, 0.0
  %v267 = vmul.f32 %v261, 0.01
  %v268 = vsel %vm266, %v261, %v267
  %v269 = vpack.c.bf16 %v268, %v268
  %v270 = vld [vmem:[%s5] sm:$0xf]
  %v271 = vld [vmem:[%s5 + $0x4] sm:$0xf]
  %v272 = vld [vmem:[%s5 + $0x8] sm:$0xf]
  %v273 = vld [vmem:[%s5 + $0xc] sm:$0xf]
  %v274 = vld [vmem:[%s5 + $0x10] sm:$0xf]
  %v275 = vld [vmem:[%s5 + $0x14] sm:$0xf]
  %v276 = vld [vmem:[%s5 + $0x18] sm:$0xf]
  %v277 = vld [vmem:[%s5 + $0x1c] sm:$0xf]
  %v278 = vld [vmem:[%s5 + $0x20] sm:$0xf]
  %v279 = vld [vmem:[%s5 + $0x24] sm:$0xf]
  %v280 = vld [vmem:[%s5 + $0x28] sm:$0xf]
  %v281 = vld [vmem:[%s5 + $0x2c] sm:$0xf]
  %v282 = vld [vmem:[%s5 + $0x30] sm:$0xf]
  %v283 = vld [vmem:[%s5 + $0x34] sm:$0xf]
  %v284 = vld [vmem:[%s5 + $0x38] sm:$0xf]
  %v285 = vld [vmem:[%s5 + $0x3c] sm:$0xf]
  %v286 = vld [vmem:[%s6] sm:$0x1]
  %v288 = vlaneseq
  %v289 = vshrl.u32 %v288, 7
  %v290 = vsub.s32 0, %v289
  %v291 = vrot.slane %v286, %v290
  %v309 = vunpack.c.l.b16 %v270
  %v310 = vunpack.c.l.b16 %v271
  %v311 = vunpack.c.l.b16 %v272
  %v312 = vunpack.c.l.b16 %v273
  %v313 = vunpack.c.l.b16 %v274
  %v314 = vunpack.c.l.b16 %v275
  %v315 = vunpack.c.l.b16 %v276
  %v316 = vunpack.c.l.b16 %v277
  %v317 = vunpack.c.l.b16 %v278
  %v318 = vunpack.c.l.b16 %v279
  %v319 = vunpack.c.l.b16 %v280
  %v320 = vunpack.c.l.b16 %v281
  %v321 = vunpack.c.l.b16 %v282
  %v322 = vunpack.c.l.b16 %v283
  %v323 = vunpack.c.l.b16 %v284
  %v324 = vunpack.c.l.b16 %v285
  %v325 = vpack.c.b16 %v310, %v309
  %v326 = vpack.c.b16 %v312, %v311
  %v327 = vpack.c.b16 %v314, %v313
  %v328 = vpack.c.b16 %v316, %v315
  %v329 = vpack.c.b16 %v318, %v317
  %v330 = vpack.c.b16 %v320, %v319
  %v331 = vpack.c.b16 %v322, %v321
  %v332 = vpack.c.b16 %v324, %v323
  %341 = vmatprep.subr.bf16.mxu0 0
  %342 = vmatpush1.bf16.msra.mxu0 %v325
  %343 = vmatprep.subr.bf16.mxu0 0
  %344 = vmatpush1.bf16.msra.mxu0 %v326
  %345 = vmatprep.subr.bf16.mxu0 0
  %346 = vmatpush1.bf16.msra.mxu0 %v327
  %347 = vmatprep.subr.bf16.mxu0 0
  %348 = vmatpush1.bf16.msra.mxu0 %v328
  %349 = vmatprep.subr.bf16.mxu0 0
  %350 = vmatpush1.bf16.msra.mxu0 %v329
  %351 = vmatprep.subr.bf16.mxu0 0
  %352 = vmatpush1.bf16.msra.mxu0 %v330
  %353 = vmatprep.subr.bf16.mxu0 0
  %354 = vmatpush1.bf16.msra.mxu0 %v331
  %355 = vmatprep.subr.bf16.mxu0 0
  %356 = vmatpush1.bf16.msra.mxu0 %v332
  %357 = vmatprep.subr.bf16.mxu0 0
  %358 = vmatpush1.bf16.msra.mxu0 0
  %359 = vmatprep.subr.bf16.mxu0 0
  %360 = vmatpush1.bf16.msra.mxu0 0
  %361 = vmatprep.subr.bf16.mxu0 0
  %362 = vmatpush1.bf16.msra.mxu0 0
  %363 = vmatprep.subr.bf16.mxu0 0
  %364 = vmatpush1.bf16.msra.mxu0 0
  %365 = vmatprep.subr.bf16.mxu0 0
  %366 = vmatpush1.bf16.msra.mxu0 0
  %367 = vmatprep.subr.bf16.mxu0 0
  %368 = vmatpush1.bf16.msra.mxu0 0
  %369 = vmatprep.subr.bf16.mxu0 0
  %370 = vmatpush1.bf16.msra.mxu0 0
  %371 = vmatprep.subr.bf16.mxu0 0
  %372 = vmatpush1.bf16.msra.mxu0 0
  %373 = vmatprep.mubr.bf16.mxu0 0
  %374 = vmatmul.mubr.bf16.gmra.mrb[0].mxu0 %v269
  %v375 = vpop.f32.mrb[0].mxu0
  %v376 = vadd.f32 %v291, %v375
  %v377 = vpop.f32.mrb[0].mxu0
  %v378 = vpop.f32.mrb[0].mxu0
  %v379 = vpop.f32.mrb[0].mxu0
  %380 = vdwg.mxu0
  %vm381 = vcmp.gt.f32.partialorder %v376, 0.0
  %v382 = vmul.f32 %v376, 0.01
  %v383 = vsel %vm381, %v376, %v382
  %v384 = vpack.c.bf16 %v383, %v383
  %v385 = vld [vmem:[%s7] sm:$0xf]
  %v386 = vld [vmem:[%s7 + $0x4] sm:$0xf]
  %v387 = vld [vmem:[%s7 + $0x8] sm:$0xf]
  %v388 = vld [vmem:[%s7 + $0xc] sm:$0xf]
  %v389 = vld [vmem:[%s7 + $0x10] sm:$0xf]
  %v390 = vld [vmem:[%s7 + $0x14] sm:$0xf]
  %v391 = vld [vmem:[%s7 + $0x18] sm:$0xf]
  %v392 = vld [vmem:[%s7 + $0x1c] sm:$0xf]
  %v393 = vld [vmem:[%s7 + $0x20] sm:$0xf]
  %v394 = vld [vmem:[%s7 + $0x24] sm:$0xf]
  %v395 = vld [vmem:[%s7 + $0x28] sm:$0xf]
  %v396 = vld [vmem:[%s7 + $0x2c] sm:$0xf]
  %v397 = vld [vmem:[%s7 + $0x30] sm:$0xf]
  %v398 = vld [vmem:[%s7 + $0x34] sm:$0xf]
  %v399 = vld [vmem:[%s7 + $0x38] sm:$0xf]
  %v400 = vld [vmem:[%s7 + $0x3c] sm:$0xf]
  %v401 = vld [vmem:[%s8] sm:$0x1]
  %v403 = vlaneseq
  %v404 = vshrl.u32 %v403, 7
  %v405 = vsub.s32 0, %v404
  %v406 = vrot.slane %v401, %v405
  %v424 = vunpack.c.l.b16 %v385
  %v425 = vunpack.c.l.b16 %v386
  %v426 = vunpack.c.l.b16 %v387
  %v427 = vunpack.c.l.b16 %v388
  %v428 = vunpack.c.l.b16 %v389
  %v429 = vunpack.c.l.b16 %v390
  %v430 = vunpack.c.l.b16 %v391
  %v431 = vunpack.c.l.b16 %v392
  %v432 = vunpack.c.l.b16 %v393
  %v433 = vunpack.c.l.b16 %v394
  %v434 = vunpack.c.l.b16 %v395
  %v435 = vunpack.c.l.b16 %v396
  %v436 = vunpack.c.l.b16 %v397
  %v437 = vunpack.c.l.b16 %v398
  %v438 = vunpack.c.l.b16 %v399
  %v439 = vunpack.c.l.b16 %v400
  %v440 = vpack.c.b16 %v425, %v424
  %v441 = vpack.c.b16 %v427, %v426
  %v442 = vpack.c.b16 %v429, %v428
  %v443 = vpack.c.b16 %v431, %v430
  %v444 = vpack.c.b16 %v433, %v432
  %v445 = vpack.c.b16 %v435, %v434
  %v446 = vpack.c.b16 %v437, %v436
  %v447 = vpack.c.b16 %v439, %v438
  %456 = vmatprep.subr.bf16.mxu0 0
  %457 = vmatpush1.bf16.msra.mxu0 %v440
  %458 = vmatprep.subr.bf16.mxu0 0
  %459 = vmatpush1.bf16.msra.mxu0 %v441
  %460 = vmatprep.subr.bf16.mxu0 0
  %461 = vmatpush1.bf16.msra.mxu0 %v442
  %462 = vmatprep.subr.bf16.mxu0 0
  %463 = vmatpush1.bf16.msra.mxu0 %v443
  %464 = vmatprep.subr.bf16.mxu0 0
  %465 = vmatpush1.bf16.msra.mxu0 %v444
  %466 = vmatprep.subr.bf16.mxu0 0
  %467 = vmatpush1.bf16.msra.mxu0 %v445
  %468 = vmatprep.subr.bf16.mxu0 0
  %469 = vmatpush1.bf16.msra.mxu0 %v446
  %470 = vmatprep.subr.bf16.mxu0 0
  %471 = vmatpush1.bf16.msra.mxu0 %v447
  %472 = vmatprep.subr.bf16.mxu0 0
  %473 = vmatpush1.bf16.msra.mxu0 0
  %474 = vmatprep.subr.bf16.mxu0 0
  %475 = vmatpush1.bf16.msra.mxu0 0
  %476 = vmatprep.subr.bf16.mxu0 0
  %477 = vmatpush1.bf16.msra.mxu0 0
  %478 = vmatprep.subr.bf16.mxu0 0
  %479 = vmatpush1.bf16.msra.mxu0 0
  %480 = vmatprep.subr.bf16.mxu0 0
  %481 = vmatpush1.bf16.msra.mxu0 0
  %482 = vmatprep.subr.bf16.mxu0 0
  %483 = vmatpush1.bf16.msra.mxu0 0
  %484 = vmatprep.subr.bf16.mxu0 0
  %485 = vmatpush1.bf16.msra.mxu0 0
  %486 = vmatprep.subr.bf16.mxu0 0
  %487 = vmatpush1.bf16.msra.mxu0 0
  %488 = vmatprep.mubr.bf16.mxu0 0
  %489 = vmatmul.mubr.bf16.gmra.mrb[0].mxu0 %v384
  %v490 = vpop.f32.mrb[0].mxu0
  %v491 = vadd.f32 %v406, %v490
  %v492 = vpop.f32.mrb[0].mxu0
  %v493 = vpop.f32.mrb[0].mxu0
  %v494 = vpop.f32.mrb[0].mxu0
  %495 = vdwg.mxu0
  %vm496 = vcmp.gt.f32.partialorder %v491, 0.0
  %v497 = vmul.f32 %v491, 0.01
  %v498 = vsel %vm496, %v491, %v497
  %v499 = vpack.c.bf16 %v498, %v498
  %v500 = vld [vmem:[%s9] sm:$0xf]
  %v501 = vld [vmem:[%s9 + $0x4] sm:$0xf]
  %v502 = vld [vmem:[%s9 + $0x8] sm:$0xf]
  %v503 = vld [vmem:[%s9 + $0xc] sm:$0xf]
  %v504 = vld [vmem:[%s9 + $0x10] sm:$0xf]
  %v505 = vld [vmem:[%s9 + $0x14] sm:$0xf]
  %v506 = vld [vmem:[%s9 + $0x18] sm:$0xf]
  %v507 = vld [vmem:[%s9 + $0x1c] sm:$0xf]
  %v508 = vld [vmem:[%s9 + $0x20] sm:$0xf]
  %v509 = vld [vmem:[%s9 + $0x24] sm:$0xf]
  %v510 = vld [vmem:[%s9 + $0x28] sm:$0xf]
  %v511 = vld [vmem:[%s9 + $0x2c] sm:$0xf]
  %v512 = vld [vmem:[%s9 + $0x30] sm:$0xf]
  %v513 = vld [vmem:[%s9 + $0x34] sm:$0xf]
  %v514 = vld [vmem:[%s9 + $0x38] sm:$0xf]
  %v515 = vld [vmem:[%s9 + $0x3c] sm:$0xf]
  %v516 = vld [vmem:[%s10] sm:$0x1]
  %v518 = vlaneseq
  %v519 = vshrl.u32 %v518, 7
  %v520 = vsub.s32 0, %v519
  %v521 = vrot.slane %v516, %v520
  %v539 = vunpack.c.l.b16 %v500
  %v540 = vunpack.c.l.b16 %v501
  %v541 = vunpack.c.l.b16 %v502
  %v542 = vunpack.c.l.b16 %v503
  %v543 = vunpack.c.l.b16 %v504
  %v544 = vunpack.c.l.b16 %v505
  %v545 = vunpack.c.l.b16 %v506
  %v546 = vunpack.c.l.b16 %v507
  %v547 = vunpack.c.l.b16 %v508
  %v548 = vunpack.c.l.b16 %v509
  %v549 = vunpack.c.l.b16 %v510
  %v550 = vunpack.c.l.b16 %v511
  %v551 = vunpack.c.l.b16 %v512
  %v552 = vunpack.c.l.b16 %v513
  %v553 = vunpack.c.l.b16 %v514
  %v554 = vunpack.c.l.b16 %v515
  %v555 = vpack.c.b16 %v540, %v539
  %v556 = vpack.c.b16 %v542, %v541
  %v557 = vpack.c.b16 %v544, %v543
  %v558 = vpack.c.b16 %v546, %v545
  %v559 = vpack.c.b16 %v548, %v547
  %v560 = vpack.c.b16 %v550, %v549
  %v561 = vpack.c.b16 %v552, %v551
  %v562 = vpack.c.b16 %v554, %v553
  %571 = vmatprep.subr.bf16.mxu0 0
  %572 = vmatpush1.bf16.msra.mxu0 %v555
  %573 = vmatprep.subr.bf16.mxu0 0
  %574 = vmatpush1.bf16.msra.mxu0 %v556
  %575 = vmatprep.subr.bf16.mxu0 0
  %576 = vmatpush1.bf16.msra.mxu0 %v557
  %577 = vmatprep.subr.bf16.mxu0 0
  %578 = vmatpush1.bf16.msra.mxu0 %v558
  %579 = vmatprep.subr.bf16.mxu0 0
  %580 = vmatpush1.bf16.msra.mxu0 %v559
  %581 = vmatprep.subr.bf16.mxu0 0
  %582 = vmatpush1.bf16.msra.mxu0 %v560
  %583 = vmatprep.subr.bf16.mxu0 0
  %584 = vmatpush1.bf16.msra.mxu0 %v561
  %585 = vmatprep.subr.bf16.mxu0 0
  %586 = vmatpush1.bf16.msra.mxu0 %v562
  %587 = vmatprep.subr.bf16.mxu0 0
  %588 = vmatpush1.bf16.msra.mxu0 0
  %589 = vmatprep.subr.bf16.mxu0 0
  %590 = vmatpush1.bf16.msra.mxu0 0
  %591 = vmatprep.subr.bf16.mxu0 0
  %592 = vmatpush1.bf16.msra.mxu0 0
  %593 = vmatprep.subr.bf16.mxu0 0
  %594 = vmatpush1.bf16.msra.mxu0 0
  %595 = vmatprep.subr.bf16.mxu0 0
  %596 = vmatpush1.bf16.msra.mxu0 0
  %597 = vmatprep.subr.bf16.mxu0 0
  %598 = vmatpush1.bf16.msra.mxu0 0
  %599 = vmatprep.subr.bf16.mxu0 0
  %600 = vmatpush1.bf16.msra.mxu0 0
  %601 = vmatprep.subr.bf16.mxu0 0
  %602 = vmatpush1.bf16.msra.mxu0 0
  %603 = vmatprep.mubr.bf16.mxu0 0
  %604 = vmatmul.mubr.bf16.gmra.mrb[0].mxu0 %v499
  %v605 = vpop.f32.mrb[0].mxu0
  %v606 = vadd.f32 %v521, %v605
  %v607 = vpop.f32.mrb[0].mxu0
  %v608 = vpop.f32.mrb[0].mxu0
  %v609 = vpop.f32.mrb[0].mxu0
  %610 = vdwg.mxu0
  %611 = vst [vmem:[%s11] sm:$0xff] %v606
  // Predicated region
  $region46: #{deep_q_network_forward.1} parent=0 // pred_check
    _
  $region47: #{deep_q_network_forward.1} parent=0 // pred_check_branch
    %613 = sbr.rel (0) target = $region49
  $region48: #{deep_q_network_forward.1} parent=0 // pred_region
    _
  $region49: #{deep_q_network_forward.1} parent=0 // pred_fallthru
    _
  // Predicated region
  $region50: #{deep_q_network_forward.1} parent=0 // pred_check
    _
  $region51: #{deep_q_network_forward.1} parent=0 // pred_check_branch
    %615 = sbr.rel (0) target = $region53
  $region52: #{deep_q_network_forward.1} parent=0 // pred_region
    _
  $region53: #{deep_q_network_forward.1} parent=0 // pred_fallthru
    _

</llo_original>
